<compile_context>
chip_gen: v7x
topology: tpu7x:2x2x1
jax: 0.10.0
libtpu: 0.0.40
codegen_flags: <defaults>
</compile_context>

<pallas_src>
import functools

import jax
import jax.numpy as jnp
from jax import lax
from jax.experimental import pallas as pl
from jax.experimental.pallas import tpu as pltpu

SMOOTH_L1_BETA = 1.0 / 9.0            # torchvision fastrcnn_loss default
_HALF_OVER_BETA = 0.5 / SMOOTH_L1_BETA
_HALF_BETA = 0.5 * SMOOTH_L1_BETA


def _round_up(x, m):
    return ((x + m - 1) // m) * m


def _fastrcnn_loss_kernel(n_valid, logits_ref, boxes_ref, labels_ref, targets_ref,
                          cls_out_ref, box_out_ref, cls_acc, box_acc):
    i = pl.program_id(1)

    @pl.when(i == 0)
    def _():
        cls_acc[...] = jnp.zeros_like(cls_acc)
        box_acc[...] = jnp.zeros_like(box_acc)

    logits = logits_ref[...].astype(jnp.float32)      # (T, C)
    boxes = boxes_ref[...].astype(jnp.float32)        # (T, 4C)
    labels = labels_ref[...]                          # (T, 1) int32
    targets = targets_ref[...].astype(jnp.float32)    # (T, 4)

    T, C = logits.shape

    # Global row index (accounts for the 2-way split on axis 0).  Rows past the
    # true N (ragged last block / clamped overrun blocks) are masked out.
    global_step = pl.program_id(0) * pl.num_programs(1) + i
    rows = lax.broadcasted_iota(jnp.int32, (T, 1), 0) + global_step * T
    valid = rows < n_valid                                            # (T, 1)

    # ---- classification: stabilized softmax cross-entropy, per-row nll ----
    m = jnp.max(logits, axis=-1, keepdims=True)
    lse = m + jnp.log(jnp.sum(jnp.exp(logits - m), axis=-1, keepdims=True))
    cols = lax.broadcasted_iota(jnp.int32, (T, C), 1)
    logit_at_label = jnp.sum(jnp.where(cols == labels, logits, 0.0),
                             axis=-1, keepdims=True)
    cls_acc[...] += jnp.where(valid, lse - logit_at_label, 0.0)       # (T, 1)

    # ---- box regression: single pass over (T, 4C) ----
    fg = jnp.logical_and(labels > 0, valid)                           # (T, 1)
    labels_eff = jnp.where(fg, labels, -1)                            # bg/pad select nothing
    bcols = lax.broadcasted_iota(jnp.int32, (T, 4 * C), 1)
    base = bcols - 4 * labels_eff                                     # GT-class cols -> 0..3
    sel = base.astype(jnp.uint32) < jnp.uint32(4)                     # neg -> huge -> False
    tgt_col = jnp.where(base == 0, targets[:, 0:1],
              jnp.where(base == 1, targets[:, 1:2],
              jnp.where(base == 2, targets[:, 2:3], targets[:, 3:4])))
    diff = jnp.where(sel, boxes - tgt_col, 0.0)                       # (T, 4C)
    absd = jnp.abs(diff)
    sl1 = jnp.where(absd < SMOOTH_L1_BETA,
                    (_HALF_OVER_BETA * diff) * diff,                  # masked cols -> exactly 0
                    absd - _HALF_BETA)
    box_acc[...] += jnp.sum(sl1, axis=-1, keepdims=True)              # (T, 1)

    # ---- finalize once on the last inner step of this split ----
    @pl.when(i == pl.num_programs(1) - 1)
    def _():
        cls_out_ref[...] = jnp.sum(cls_acc[...], axis=0, keepdims=True).reshape(1, 1, 1)
        box_out_ref[...] = jnp.sum(box_acc[...], axis=0, keepdims=True).reshape(1, 1, 1)


def fastrcnn_loss(class_logits, box_regression, labels, regression_targets, *,
                  tile_n=2048):
    """class_logits (N,C), box_regression (N,4C), labels (N,), regression_targets (N,4)."""
    N, C = class_logits.shape
    assert box_regression.shape == (N, 4 * C)
    assert N > 0, "FastRCNNLoss requires at least one proposal"

    # Multiple of 16 keeps bf16 inputs legal; harmless for f32.
    tile = min(_round_up(tile_n, 16), _round_up(N, 16))
    n_blocks = pl.cdiv(N, tile)

    # Split the N-reduction across two TensorCores on v7x (parallel leading
    # axis); on single-TC chips this is just a partition of the serial loop.
    num_splits = 2 if n_blocks >= 2 else 1
    steps = pl.cdiv(n_blocks, num_splits)

    labels_2d = labels.reshape(N, 1).astype(jnp.int32)

    def row_map(p, i):
        # Clamp so every block stays in bounds; overrun steps are fully masked
        # in-kernel via the global-row check.
        return (jnp.minimum(p * steps + i, n_blocks - 1), 0)

    kernel = functools.partial(_fastrcnn_loss_kernel, N)
    cls_parts, box_parts = pl.pallas_call(
        kernel,
        out_shape=(jax.ShapeDtypeStruct((num_splits, 1, 1), jnp.float32),
                   jax.ShapeDtypeStruct((num_splits, 1, 1), jnp.float32)),
        grid=(num_splits, steps),
        in_specs=[
            pl.BlockSpec((tile, C), row_map),
            pl.BlockSpec((tile, 4 * C), row_map),
            pl.BlockSpec((tile, 1), row_map),
            pl.BlockSpec((tile, 4), row_map),
        ],
        out_specs=(
            pl.BlockSpec((1, 1, 1), lambda p, i: (p, 0, 0)),
            pl.BlockSpec((1, 1, 1), lambda p, i: (p, 0, 0)),
        ),
        scratch_shapes=[pltpu.VMEM((tile, 1), jnp.float32),
                        pltpu.VMEM((tile, 1), jnp.float32)],
        compiler_params=pltpu.CompilerParams(
            dimension_semantics=("parallel", "arbitrary")),
    )(class_logits, box_regression, labels_2d, regression_targets)

    inv_n = jnp.float32(1.0 / N)
    return jnp.sum(cls_parts) * inv_n, jnp.sum(box_parts) * inv_n


def _reference(class_logits, box_regression, labels, regression_targets):
    """Pure-JAX reference for sanity checking."""
    N, C = class_logits.shape
    logp = jax.nn.log_softmax(class_logits, axis=-1)
    loss_cls = -jnp.mean(logp[jnp.arange(N), labels])
    boxes = box_regression.reshape(N, C, 4)[jnp.arange(N), labels]   # (N, 4)
    diff = boxes - regression_targets
    absd = jnp.abs(diff)
    sl1 = jnp.where(absd < SMOOTH_L1_BETA,
                    0.5 * diff * diff / SMOOTH_L1_BETA,
                    absd - 0.5 * SMOOTH_L1_BETA)
    fg = (labels > 0)[:, None]
    loss_box = jnp.sum(jnp.where(fg, sl1, 0.0)) / N
    return loss_cls, loss_box


if __name__ == "__main__":
    # Test 1: single tile, single split (N=16 proposals, C=8 classes, class 0 = bg).
    k1, k2, k3, k4 = jax.random.split(jax.random.PRNGKey(0), 4)
    N, C = 16, 8
    class_logits = jax.random.normal(k1, (N, C), dtype=jnp.float32)
    box_regression = jax.random.normal(k2, (N, 4 * C), dtype=jnp.float32)
    labels = jax.random.randint(k3, (N,), 0, C, dtype=jnp.int32)
    regression_targets = 0.1 * jax.random.normal(k4, (N, 4), dtype=jnp.float32)

    loss_cls, loss_box = fastrcnn_loss(class_logits, box_regression, labels,
                                       regression_targets)
    jax.block_until_ready((loss_cls, loss_box))
    ref_cls, ref_box = _reference(class_logits, box_regression, labels,
                                  regression_targets)
    assert jnp.allclose(loss_cls, ref_cls, rtol=1e-5, atol=1e-5), (loss_cls, ref_cls)
    assert jnp.allclose(loss_box, ref_box, rtol=1e-5, atol=1e-5), (loss_box, ref_box)

    # Test 2: multi-block grid with ragged last block + 2-way split
    # (N=37, tile=16 -> 3 blocks, split into 2x2 steps with one masked overrun).
    k5, k6, k7, k8 = jax.random.split(jax.random.PRNGKey(1), 4)
    N2, C2 = 37, 6
    cl2 = jax.random.normal(k5, (N2, C2), dtype=jnp.float32)
    br2 = jax.random.normal(k6, (N2, 4 * C2), dtype=jnp.float32)
    lb2 = jax.random.randint(k7, (N2,), 0, C2, dtype=jnp.int32)
    rt2 = 0.1 * jax.random.normal(k8, (N2, 4), dtype=jnp.float32)

    lc2, lbx2 = fastrcnn_loss(cl2, br2, lb2, rt2, tile_n=16)
    jax.block_until_ready((lc2, lbx2))
    rc2, rb2 = _reference(cl2, br2, lb2, rt2)
    assert jnp.allclose(lc2, rc2, rtol=1e-5, atol=1e-5), (lc2, rc2)
    assert jnp.allclose(lbx2, rb2, rtol=1e-5, atol=1e-5), (lbx2, rb2)

    # Test 3: bf16 inputs kept on the wire, upcast to f32 inside the kernel.
    k9, k10, k11, k12 = jax.random.split(jax.random.PRNGKey(2), 4)
    N3, C3 = 48, 5
    cl3 = jax.random.normal(k9, (N3, C3), dtype=jnp.float32).astype(jnp.bfloat16)
    br3 = jax.random.normal(k10, (N3, 4 * C3), dtype=jnp.float32).astype(jnp.bfloat16)
    lb3 = jax.random.randint(k11, (N3,), 0, C3, dtype=jnp.int32)
    rt3 = (0.1 * jax.random.normal(k12, (N3, 4), dtype=jnp.float32)).astype(jnp.bfloat16)

    lc3, lbx3 = fastrcnn_loss(cl3, br3, lb3, rt3, tile_n=32)
    jax.block_until_ready((lc3, lbx3))
    rc3, rb3 = _reference(cl3.astype(jnp.float32), br3.astype(jnp.float32),
                          lb3, rt3.astype(jnp.float32))
    assert jnp.allclose(lc3, rc3, rtol=1e-5, atol=1e-5), (lc3, rc3)
    assert jnp.allclose(lbx3, rb3, rtol=1e-5, atol=1e-5), (lbx3, rb3)

    print("KERNEL_OK")
</pallas_src>

<mosaic_0001>
module attributes {stable_mosaic.version = 11 : i64} {
  func.func @_fastrcnn_loss_kernel(%arg0: i32, %arg1: i32, %arg2: memref<16x8xf32, #tpu.memory_space<vmem>>, %arg3: memref<16x32xf32, #tpu.memory_space<vmem>>, %arg4: memref<16x1xi32, #tpu.memory_space<vmem>>, %arg5: memref<16x4xf32, #tpu.memory_space<vmem>>, %arg6: memref<1x1x1xf32, #tpu.memory_space<vmem>>, %arg7: memref<1x1x1xf32, #tpu.memory_space<vmem>>, %arg8: memref<16x1xf32, #tpu.memory_space<vmem>>, %arg9: memref<16x1xf32, #tpu.memory_space<vmem>>) attributes {dimension_semantics = [#tpu.dimension_semantics<parallel>, #tpu.dimension_semantics<arbitrary>], iteration_bounds = array<i64: 1, 1>, scalar_prefetch = 0 : i64, scratch_operands = 2 : i64, tpu.core_type = #tpu.core_type<tc>, window_params = [{transform_indices = @transform_0, window_bounds = array<i64: 16, 8>}, {transform_indices = @transform_1, window_bounds = array<i64: 16, 32>}, {transform_indices = @transform_2, window_bounds = array<i64: 16, 1>}, {transform_indices = @transform_3, window_bounds = array<i64: 16, 4>}, {transform_indices = @transform_4, window_bounds = array<i64: 1, 1, 1>}, {transform_indices = @transform_5, window_bounds = array<i64: 1, 1, 1>}]} {
    %c0_i32 = arith.constant 0 : i32
    %0 = arith.cmpi eq, %arg1, %c0_i32 : i32
    %1 = arith.extui %0 : i1 to i32
    %c0_i32_0 = arith.constant 0 : i32
    %2 = arith.cmpi ne, %1, %c0_i32_0 : i32
    scf.if %2 {
      %cst_32 = arith.constant 0.000000e+00 : f32
      %90 = vector.broadcast %cst_32 : f32 to vector<16x1xf32>
      %c0_33 = arith.constant 0 : index
      %c0_34 = arith.constant 0 : index
      %91 = vector.load %arg8[%c0_33, %c0_34] : memref<16x1xf32, #tpu.memory_space<vmem>>, vector<16x1xf32>
      tpu.vector_store %arg8[%c0_33, %c0_34], %90 {strides = array<i32>} : memref<16x1xf32, #tpu.memory_space<vmem>>, vector<16x1xf32>,
      %cst_35 = arith.constant 0.000000e+00 : f32
      %92 = vector.broadcast %cst_35 : f32 to vector<16x1xf32>
      %c0_36 = arith.constant 0 : index
      %c0_37 = arith.constant 0 : index
      %93 = vector.load %arg9[%c0_36, %c0_37] : memref<16x1xf32, #tpu.memory_space<vmem>>, vector<16x1xf32>
      tpu.vector_store %arg9[%c0_36, %c0_37], %92 {strides = array<i32>} : memref<16x1xf32, #tpu.memory_space<vmem>>, vector<16x1xf32>,
    } else {
    }
    %c0 = arith.constant 0 : index
    %c0_1 = arith.constant 0 : index
    %3 = vector.load %arg2[%c0, %c0_1] : memref<16x8xf32, #tpu.memory_space<vmem>>, vector<16x8xf32>
    %c0_2 = arith.constant 0 : index
    %c0_3 = arith.constant 0 : index
    %4 = vector.load %arg3[%c0_2, %c0_3] : memref<16x32xf32, #tpu.memory_space<vmem>>, vector<16x32xf32>
    %c0_4 = arith.constant 0 : index
    %c0_5 = arith.constant 0 : index
    %5 = vector.load %arg4[%c0_4, %c0_5] : memref<16x1xi32, #tpu.memory_space<vmem>>, vector<16x1xi32>
    %c0_6 = arith.constant 0 : index
    %c0_7 = arith.constant 0 : index
    %6 = vector.load %arg5[%c0_6, %c0_7] : memref<16x4xf32, #tpu.memory_space<vmem>>, vector<16x4xf32>
    %c1_i32 = arith.constant 1 : i32
    %7 = arith.muli %arg0, %c1_i32 : i32
    %8 = arith.addi %7, %arg1 : i32
    %9 = tpu.iota {dimensions = array<i32: 0>} : vector<16x1xi32>
    %c16_i32 = arith.constant 16 : i32
    %10 = arith.muli %8, %c16_i32 : i32
    %11 = vector.broadcast %10 : i32 to vector<16x1xi32>
    %12 = arith.addi %9, %11 : vector<16x1xi32>
    %c16_i32_8 = arith.constant 16 : i32
    %13 = vector.broadcast %c16_i32_8 : i32 to vector<16x1xi32>
    %14 = arith.cmpi slt, %12, %13 : vector<16x1xi32>
    %cst = arith.constant dense<0xFF800000> : vector<16xf32>
    %15 = vector.multi_reduction <maximumf>, %3, %cst [1] : vector<16x8xf32> to vector<16xf32>
    %16 = vector.shape_cast %15 : vector<16xf32> to vector<16x1xf32>
    %17 = vector.broadcast %16 : vector<16x1xf32> to vector<16x8xf32>
    %18 = arith.subf %3, %17 : vector<16x8xf32>
    %19 = math.exp %18 : vector<16x8xf32>
    %cst_9 = arith.constant dense<0.000000e+00> : vector<16xf32>
    %20 = vector.multi_reduction <add>, %19, %cst_9 [1] : vector<16x8xf32> to vector<16xf32>
    %21 = vector.shape_cast %20 : vector<16xf32> to vector<16x1xf32>
    %22 = math.log %21 : vector<16x1xf32>
    %23 = arith.addf %16, %22 : vector<16x1xf32>
    %24 = tpu.iota {dimensions = array<i32: 1>} : vector<16x8xi32>
    %25 = vector.broadcast %5 : vector<16x1xi32> to vector<16x8xi32>
    %26 = arith.cmpi eq, %24, %25 : vector<16x8xi32>
    %cst_10 = arith.constant 0.000000e+00 : f32
    %27 = vector.broadcast %cst_10 : f32 to vector<16x8xf32>
    %28 = arith.select %26, %3, %27 : vector<16x8xi1>, vector<16x8xf32>
    %cst_11 = arith.constant dense<0.000000e+00> : vector<16xf32>
    %29 = vector.multi_reduction <add>, %28, %cst_11 [1] : vector<16x8xf32> to vector<16xf32>
    %30 = vector.shape_cast %29 : vector<16xf32> to vector<16x1xf32>
    %c0_12 = arith.constant 0 : index
    %c0_13 = arith.constant 0 : index
    %31 = vector.load %arg8[%c0_12, %c0_13] : memref<16x1xf32, #tpu.memory_space<vmem>>, vector<16x1xf32>
    %32 = arith.subf %23, %30 : vector<16x1xf32>
    %cst_14 = arith.constant 0.000000e+00 : f32
    %33 = vector.broadcast %cst_14 : f32 to vector<16x1xf32>
    %34 = arith.select %14, %32, %33 : vector<16x1xi1>, vector<16x1xf32>
    %35 = arith.addf %31, %34 : vector<16x1xf32>
    %c0_15 = arith.constant 0 : index
    %c0_16 = arith.constant 0 : index
    %36 = vector.load %arg8[%c0_15, %c0_16] : memref<16x1xf32, #tpu.memory_space<vmem>>, vector<16x1xf32>
    tpu.vector_store %arg8[%c0_15, %c0_16], %35 {strides = array<i32>} : memref<16x1xf32, #tpu.memory_space<vmem>>, vector<16x1xf32>,
    %c0_i32_17 = arith.constant 0 : i32
    %37 = vector.broadcast %c0_i32_17 : i32 to vector<16x1xi32>
    %38 = arith.cmpi sgt, %5, %37 : vector<16x1xi32>
    %39 = arith.andi %38, %14 : vector<16x1xi1>
    %c-1_i32 = arith.constant -1 : i32
    %40 = vector.broadcast %c-1_i32 : i32 to vector<16x1xi32>
    %41 = arith.select %39, %5, %40 : vector<16x1xi1>, vector<16x1xi32>
    %42 = tpu.iota {dimensions = array<i32: 1>} : vector<16x32xi32>
    %c4_i32 = arith.constant 4 : i32
    %43 = vector.broadcast %c4_i32 : i32 to vector<16x1xi32>
    %44 = arith.muli %43, %41 : vector<16x1xi32>
    %45 = vector.broadcast %44 : vector<16x1xi32> to vector<16x32xi32>
    %46 = arith.subi %42, %45 : vector<16x32xi32>
    %c4_i32_18 = arith.constant 4 : i32
    %47 = vector.broadcast %c4_i32_18 : i32 to vector<16x32xi32>
    %48 = arith.cmpi ult, %46, %47 : vector<16x32xi32>
    %c0_i32_19 = arith.constant 0 : i32
    %49 = vector.broadcast %c0_i32_19 : i32 to vector<16x32xi32>
    %50 = arith.cmpi eq, %46, %49 : vector<16x32xi32>
    %51 = vector.extract_strided_slice %6 {offsets = [0, 0], sizes = [16, 1], strides = [1, 1]} : vector<16x4xf32> to vector<16x1xf32>
    %c1_i32_20 = arith.constant 1 : i32
    %52 = vector.broadcast %c1_i32_20 : i32 to vector<16x32xi32>
    %53 = arith.cmpi eq, %46, %52 : vector<16x32xi32>
    %54 = vector.extract_strided_slice %6 {offsets = [0, 1], sizes = [16, 1], strides = [1, 1]} : vector<16x4xf32> to vector<16x1xf32>
    %c2_i32 = arith.constant 2 : i32
    %55 = vector.broadcast %c2_i32 : i32 to vector<16x32xi32>
    %56 = arith.cmpi eq, %46, %55 : vector<16x32xi32>
    %57 = vector.extract_strided_slice %6 {offsets = [0, 2], sizes = [16, 1], strides = [1, 1]} : vector<16x4xf32> to vector<16x1xf32>
    %58 = vector.extract_strided_slice %6 {offsets = [0, 3], sizes = [16, 1], strides = [1, 1]} : vector<16x4xf32> to vector<16x1xf32>
    %59 = vector.shape_cast %57 : vector<16x1xf32> to vector<16x1xf32>
    %60 = vector.broadcast %59 : vector<16x1xf32> to vector<16x32xf32>
    %61 = vector.shape_cast %58 : vector<16x1xf32> to vector<16x1xf32>
    %62 = vector.broadcast %61 : vector<16x1xf32> to vector<16x32xf32>
    %63 = arith.select %56, %60, %62 : vector<16x32xi1>, vector<16x32xf32>
    %64 = vector.shape_cast %54 : vector<16x1xf32> to vector<16x1xf32>
    %65 = vector.broadcast %64 : vector<16x1xf32> to vector<16x32xf32>
    %66 = arith.select %53, %65, %63 : vector<16x32xi1>, vector<16x32xf32>
    %67 = vector.shape_cast %51 : vector<16x1xf32> to vector<16x1xf32>
    %68 = vector.broadcast %67 : vector<16x1xf32> to vector<16x32xf32>
    %69 = arith.select %50, %68, %66 : vector<16x32xi1>, vector<16x32xf32>
    %70 = arith.subf %4, %69 : vector<16x32xf32>
    %cst_21 = arith.constant 0.000000e+00 : f32
    %71 = vector.broadcast %cst_21 : f32 to vector<16x32xf32>
    %72 = arith.select %48, %70, %71 : vector<16x32xi1>, vector<16x32xf32>
    %73 = math.absf %72 : vector<16x32xf32>
    %cst_22 = arith.constant 0.111111112 : f32
    %74 = vector.broadcast %cst_22 : f32 to vector<16x32xf32>
    %75 = arith.cmpf olt, %73, %74 : vector<16x32xf32>
    %cst_23 = arith.constant 4.500000e+00 : f32
    %76 = vector.broadcast %cst_23 : f32 to vector<16x32xf32>
    %77 = arith.mulf %76, %72 : vector<16x32xf32>
    %78 = arith.mulf %77, %72 : vector<16x32xf32>
    %cst_24 = arith.constant 0.055555556 : f32
    %79 = vector.broadcast %cst_24 : f32 to vector<16x32xf32>
    %80 = arith.subf %73, %79 : vector<16x32xf32>
    %81 = arith.select %75, %78, %80 : vector<16x32xi1>, vector<16x32xf32>
    %c0_25 = arith.constant 0 : index
    %c0_26 = arith.constant 0 : index
    %82 = vector.load %arg9[%c0_25, %c0_26] : memref<16x1xf32, #tpu.memory_space<vmem>>, vector<16x1xf32>
    %cst_27 = arith.constant dense<0.000000e+00> : vector<16xf32>
    %83 = vector.multi_reduction <add>, %81, %cst_27 [1] : vector<16x32xf32> to vector<16xf32>
    %84 = vector.shape_cast %83 : vector<16xf32> to vector<16x1xf32>
    %85 = arith.addf %82, %84 : vector<16x1xf32>
    %c0_28 = arith.constant 0 : index
    %c0_29 = arith.constant 0 : index
    %86 = vector.load %arg9[%c0_28, %c0_29] : memref<16x1xf32, #tpu.memory_space<vmem>>, vector<16x1xf32>
    tpu.vector_store %arg9[%c0_28, %c0_29], %85 {strides = array<i32>} : memref<16x1xf32, #tpu.memory_space<vmem>>, vector<16x1xf32>,
    %c0_i32_30 = arith.constant 0 : i32
    %87 = arith.cmpi eq, %arg1, %c0_i32_30 : i32
    %88 = arith.extui %87 : i1 to i32
    %c0_i32_31 = arith.constant 0 : i32
    %89 = arith.cmpi ne, %88, %c0_i32_31 : i32
    scf.if %89 {
      %c0_32 = arith.constant 0 : index
      %c0_33 = arith.constant 0 : index
      %90 = vector.load %arg8[%c0_32, %c0_33] : memref<16x1xf32, #tpu.memory_space<vmem>>, vector<16x1xf32>
      %cst_34 = arith.constant dense<0.000000e+00> : vector<1xf32>
      %91 = vector.multi_reduction <add>, %90, %cst_34 [0] : vector<16x1xf32> to vector<1xf32>
      %92 = vector.shape_cast %91 : vector<1xf32> to vector<1x1xf32>
      %93 = vector.shape_cast %92 : vector<1x1xf32> to vector<1x1x1xf32>
      %c0_35 = arith.constant 0 : index
      %c0_36 = arith.constant 0 : index
      %c0_37 = arith.constant 0 : index
      %94 = vector.load %arg6[%c0_35, %c0_36, %c0_37] : memref<1x1x1xf32, #tpu.memory_space<vmem>>, vector<1x1x1xf32>
      tpu.vector_store %arg6[%c0_35, %c0_36, %c0_37], %93 {strides = array<i32>} : memref<1x1x1xf32, #tpu.memory_space<vmem>>, vector<1x1x1xf32>,
      %c0_38 = arith.constant 0 : index
      %c0_39 = arith.constant 0 : index
      %95 = vector.load %arg9[%c0_38, %c0_39] : memref<16x1xf32, #tpu.memory_space<vmem>>, vector<16x1xf32>
      %cst_40 = arith.constant dense<0.000000e+00> : vector<1xf32>
      %96 = vector.multi_reduction <add>, %95, %cst_40 [0] : vector<16x1xf32> to vector<1xf32>
      %97 = vector.shape_cast %96 : vector<1xf32> to vector<1x1xf32>
      %98 = vector.shape_cast %97 : vector<1x1xf32> to vector<1x1x1xf32>
      %c0_41 = arith.constant 0 : index
      %c0_42 = arith.constant 0 : index
      %c0_43 = arith.constant 0 : index
      %99 = vector.load %arg7[%c0_41, %c0_42, %c0_43] : memref<1x1x1xf32, #tpu.memory_space<vmem>>, vector<1x1x1xf32>
      tpu.vector_store %arg7[%c0_41, %c0_42, %c0_43], %98 {strides = array<i32>} : memref<1x1x1xf32, #tpu.memory_space<vmem>>, vector<1x1x1xf32>,
    } else {
    }
    return
  }
  func.func @transform_0(%arg0: i32, %arg1: i32) -> (i32, i32) {
    %c1_i32 = arith.constant 1 : i32
    %0 = arith.muli %arg0, %c1_i32 : i32
    %1 = arith.addi %0, %arg1 : i32
    %c0_i32 = arith.constant 0 : i32
    %2 = arith.minsi %1, %c0_i32 : i32
    %c0_i32_0 = arith.constant 0 : i32
    %c0_i32_1 = arith.constant 0 : i32
    return %2, %c0_i32_0 : i32, i32
  }
  func.func @transform_1(%arg0: i32, %arg1: i32) -> (i32, i32) {
    %c1_i32 = arith.constant 1 : i32
    %0 = arith.muli %arg0, %c1_i32 : i32
    %1 = arith.addi %0, %arg1 : i32
    %c0_i32 = arith.constant 0 : i32
    %2 = arith.minsi %1, %c0_i32 : i32
    %c0_i32_0 = arith.constant 0 : i32
    %c0_i32_1 = arith.constant 0 : i32
    return %2, %c0_i32_0 : i32, i32
  }
  func.func @transform_2(%arg0: i32, %arg1: i32) -> (i32, i32) {
    %c1_i32 = arith.constant 1 : i32
    %0 = arith.muli %arg0, %c1_i32 : i32
    %1 = arith.addi %0, %arg1 : i32
    %c0_i32 = arith.constant 0 : i32
    %2 = arith.minsi %1, %c0_i32 : i32
    %c0_i32_0 = arith.constant 0 : i32
    %c0_i32_1 = arith.constant 0 : i32
    return %2, %c0_i32_0 : i32, i32
  }
  func.func @transform_3(%arg0: i32, %arg1: i32) -> (i32, i32) {
    %c1_i32 = arith.constant 1 : i32
    %0 = arith.muli %arg0, %c1_i32 : i32
    %1 = arith.addi %0, %arg1 : i32
    %c0_i32 = arith.constant 0 : i32
    %2 = arith.minsi %1, %c0_i32 : i32
    %c0_i32_0 = arith.constant 0 : i32
    %c0_i32_1 = arith.constant 0 : i32
    return %2, %c0_i32_0 : i32, i32
  }
  func.func @transform_4(%arg0: i32, %arg1: i32) -> (i32, i32, i32) {
    %c0_i32 = arith.constant 0 : i32
    %c0_i32_0 = arith.constant 0 : i32
    %c0_i32_1 = arith.constant 0 : i32
    return %arg0, %c0_i32, %c0_i32_0 : i32, i32, i32
  }
  func.func @transform_5(%arg0: i32, %arg1: i32) -> (i32, i32, i32) {
    %c0_i32 = arith.constant 0 : i32
    %c0_i32_0 = arith.constant 0 : i32
    %c0_i32_1 = arith.constant 0 : i32
    return %arg0, %c0_i32, %c0_i32_0 : i32, i32, i32
  }
}

</mosaic_0001>

<llo_original>
// kernel: tpu_custom_call.1
$region0: #{tpu_custom_call.1}
  #allocation0 [shape = 'u32[]', space=smem, size = 0x4, offset = 0x4, fixed_abs, tag = 'smem constant byte address 0x4 - core index']
  #allocation1 [shape = 'u32[144,128]{1,0:T(1,128)}', space=vmem, size = 0x12000, scoped, tag = 'internal scratch']
  #allocation2 [shape = 'f32[16,1]{1,0:T(8,128)}', space=vmem, size = 0x2000, scoped, tag = 'scratch operand']
  #allocation3 [shape = 'f32[16,1]{1,0:T(8,128)}', space=vmem, size = 0x2000, scoped, tag = 'scratch operand']
  %s0 = inlined_call_operand.vmem [shape: f32[16,8], index: 0, kind: input, shape index: {}]
  %s1 = inlined_call_operand.vmem [shape: f32[16,32], index: 1, kind: input, shape index: {}]
  %s2 = inlined_call_operand.vmem [shape: s32[16,1], index: 2, kind: input, shape index: {}]
  %s3 = inlined_call_operand.vmem [shape: f32[16,4], index: 3, kind: input, shape index: {}]
  %s4 = inlined_call_operand.hbm [shape: f32[1,1,1], index: 4, kind: output, shape index: {0}]
  %s5 = inlined_call_operand.hbm [shape: f32[1,1,1], index: 5, kind: output, shape index: {1}]
  %6 = xla_tuple %s4, %s5
  %s7 = sld [smem:[#allocation0]]
  $region42: #{tpu_custom_call.1} parent=0
    _
  %s9 = ssub.s32 1, %s7
  %s10 = scalar_select 0, %s9, %s7
  $region1: #{tpu_custom_call.1} parent=0
    #allocation4 [shape = 'u8[512]{0}', space=vmem, size = 0x400, scoped, tag = 'output window, operand 0, single buffered']
    #allocation5 [shape = 's32[1]{0}', space=sflag, size = 0x4, scoped, tag = 'scoped memory for tpu_custom_call.1']
    #allocation6 [shape = 'u8[512]{0}', space=vmem, size = 0x400, scoped, tag = 'output window, operand 1, single buffered']
    #allocation7 [shape = 's32[1]{0}', space=sflag, size = 0x4, scoped, tag = 'scoped memory for tpu_custom_call.1']
    %11 = vsyncpa [#allocation5], 0
    %12 = vsyncpa [#allocation7], 0
    // Predicated region
    $region2: #{tpu_custom_call.1} parent=1 // pred_check
      _
    $region3: #{tpu_custom_call.1} parent=1 // pred_check_branch
      %14 = sbr.rel (0) target = $region5
    $region4: #{tpu_custom_call.1} parent=1 // pred_region
      %s15 = sadd.s32 0, 0
      %p16 = scmp.lt.s32.totalorder %s15, 0
      %s17 = scalar_select %p16, %s15, 0
      %s18 = smul.u32 2, %s17
      %p19 = scmp.lt.s32.totalorder %s18, 1
      %s20 = scalar_select %p19, %s18, 1
      %s21 = smul.addr %s20, 8
      %s22 = scalar_lea.vmem %s0, %s21
      %s23 = sadd.s32 0, 0
      %p24 = scmp.lt.s32.totalorder %s23, 0
      %s25 = scalar_select %p24, %s23, 0
      %s26 = smul.u32 2, %s25
    $region5: #{tpu_custom_call.1} parent=1 // pred_fallthru
      _
    // Predicated region
    $region6: #{tpu_custom_call.1} parent=1 // pred_check
      _
    $region7: #{tpu_custom_call.1} parent=1 // pred_check_branch
      %28 = sbr.rel (0) target = $region9
    $region8: #{tpu_custom_call.1} parent=1 // pred_region
      %s29 = sadd.s32 0, 0
      %p30 = scmp.lt.s32.totalorder %s29, 0
      %s31 = scalar_select %p30, %s29, 0
      %s32 = smul.u32 2, %s31
      %p33 = scmp.lt.s32.totalorder %s32, 1
      %s34 = scalar_select %p33, %s32, 1
      %s35 = smul.addr %s34, 8
      %s36 = scalar_lea.vmem %s1, %s35
      %s37 = sadd.s32 0, 0
      %p38 = scmp.lt.s32.totalorder %s37, 0
      %s39 = scalar_select %p38, %s37, 0
      %s40 = smul.u32 2, %s39
    $region9: #{tpu_custom_call.1} parent=1 // pred_fallthru
      _
    // Predicated region
    $region10: #{tpu_custom_call.1} parent=1 // pred_check
      _
    $region11: #{tpu_custom_call.1} parent=1 // pred_check_branch
      %42 = sbr.rel (0) target = $region13
    $region12: #{tpu_custom_call.1} parent=1 // pred_region
      %s43 = sadd.s32 0, 0
      %p44 = scmp.lt.s32.totalorder %s43, 0
      %s45 = scalar_select %p44, %s43, 0
      %s46 = smul.u32 2, %s45
      %p47 = scmp.lt.s32.totalorder %s46, 1
      %s48 = scalar_select %p47, %s46, 1
      %s49 = smul.addr %s48, 8
      %s50 = scalar_lea.vmem %s2, %s49
      %s51 = sadd.s32 0, 0
      %p52 = scmp.lt.s32.totalorder %s51, 0
      %s53 = scalar_select %p52, %s51, 0
      %s54 = smul.u32 2, %s53
    $region13: #{tpu_custom_call.1} parent=1 // pred_fallthru
      _
    // Predicated region
    $region14: #{tpu_custom_call.1} parent=1 // pred_check
      _
    $region15: #{tpu_custom_call.1} parent=1 // pred_check_branch
      %56 = sbr.rel (0) target = $region17
    $region16: #{tpu_custom_call.1} parent=1 // pred_region
      %s57 = sadd.s32 0, 0
      %p58 = scmp.lt.s32.totalorder %s57, 0
      %s59 = scalar_select %p58, %s57, 0
      %s60 = smul.u32 2, %s59
      %p61 = scmp.lt.s32.totalorder %s60, 1
      %s62 = scalar_select %p61, %s60, 1
      %s63 = smul.addr %s62, 8
      %s64 = scalar_lea.vmem %s3, %s63
      %s65 = sadd.s32 0, 0
      %p66 = scmp.lt.s32.totalorder %s65, 0
      %s67 = scalar_select %p66, %s65, 0
      %s68 = smul.u32 2, %s67
    $region17: #{tpu_custom_call.1} parent=1 // pred_fallthru
      _
    %s69 = sadd.s32 0, 0
    %p70 = scmp.lt.s32.totalorder %s69, 0
    %s71 = scalar_select %p70, %s69, 0
    %s72 = smul.u32 2, %s71
    %p73 = scmp.lt.s32.totalorder %s72, 1
    %s74 = scalar_select %p73, %s72, 1
    %s75 = smul.addr %s74, 8
    %s76 = scalar_lea.vmem %s0, %s75
    %s77 = sadd.s32 0, 0
    %p78 = scmp.lt.s32.totalorder %s77, 0
    %s79 = scalar_select %p78, %s77, 0
    %s80 = smul.u32 2, %s79
    %p81 = scmp.lt.s32.totalorder %s80, 1
    %s82 = scalar_select %p81, %s80, 1
    %s83 = smul.addr %s82, 8
    %s84 = scalar_lea.vmem %s1, %s83
    %s85 = sadd.s32 0, 0
    %p86 = scmp.lt.s32.totalorder %s85, 0
    %s87 = scalar_select %p86, %s85, 0
    %s88 = smul.u32 2, %s87
    %p89 = scmp.lt.s32.totalorder %s88, 1
    %s90 = scalar_select %p89, %s88, 1
    %s91 = smul.addr %s90, 8
    %s92 = scalar_lea.vmem %s2, %s91
    %s93 = sadd.s32 0, 0
    %p94 = scmp.lt.s32.totalorder %s93, 0
    %s95 = scalar_select %p94, %s93, 0
    %s96 = smul.u32 2, %s95
    %p97 = scmp.lt.s32.totalorder %s96, 1
    %s98 = scalar_select %p97, %s96, 1
    %s99 = smul.addr %s98, 8
    %s100 = scalar_lea.vmem %s3, %s99
    %s101 = sadd.s32 0, 0
    %p102 = scmp.lt.s32.totalorder %s101, 0
    %s103 = scalar_select %p102, %s101, 0
    %s104 = smul.u32 2, %s103
    %p105 = scmp.lt.s32.totalorder %s104, 1
    %s106 = scalar_select %p105, %s104, 1
    %s107 = smul.addr %s106, 8
    %s108 = scalar_lea.vmem %s0, %s107
    %s109 = sadd.s32 0, 0
    %p110 = scmp.lt.s32.totalorder %s109, 0
    %s111 = scalar_select %p110, %s109, 0
    %s112 = smul.u32 2, %s111
    %s113 = sadd.s32 0, 0
    %p114 = scmp.lt.s32.totalorder %s113, 0
    %s115 = scalar_select %p114, %s113, 0
    %s116 = smul.u32 2, %s115
    %p117 = scmp.lt.s32.totalorder %s116, 1
    %s118 = scalar_select %p117, %s116, 1
    %s119 = smul.addr %s118, 8
    %s120 = scalar_lea.vmem %s1, %s119
    %s121 = sadd.s32 0, 0
    %p122 = scmp.lt.s32.totalorder %s121, 0
    %s123 = scalar_select %p122, %s121, 0
    %s124 = smul.u32 2, %s123
    %s125 = sadd.s32 0, 0
    %p126 = scmp.lt.s32.totalorder %s125, 0
    %s127 = scalar_select %p126, %s125, 0
    %s128 = smul.u32 2, %s127
    %p129 = scmp.lt.s32.totalorder %s128, 1
    %s130 = scalar_select %p129, %s128, 1
    %s131 = smul.addr %s130, 8
    %s132 = scalar_lea.vmem %s2, %s131
    %s133 = sadd.s32 0, 0
    %p134 = scmp.lt.s32.totalorder %s133, 0
    %s135 = scalar_select %p134, %s133, 0
    %s136 = smul.u32 2, %s135
    %s137 = sadd.s32 0, 0
    %p138 = scmp.lt.s32.totalorder %s137, 0
    %s139 = scalar_select %p138, %s137, 0
    %s140 = smul.u32 2, %s139
    %p141 = scmp.lt.s32.totalorder %s140, 1
    %s142 = scalar_select %p141, %s140, 1
    %s143 = smul.addr %s142, 8
    %s144 = scalar_lea.vmem %s3, %s143
    %s145 = sadd.s32 0, 0
    %p146 = scmp.lt.s32.totalorder %s145, 0
    %s147 = scalar_select %p146, %s145, 0
    %s148 = smul.u32 2, %s147
    %p149 = scmp.eq.s32.totalorder 0, 0
    // Predicated region
    $region18: #{tpu_custom_call.1} parent=1 // pred_check
      %p150 = pneg %p149
    $region19: #{tpu_custom_call.1} parent=1 // pred_check_branch
      %152 = sbr.rel (%p150) target = $region21
    $region20: #{tpu_custom_call.1} parent=1 // pred_region
      %vm153 = vcmask 7168
      %154 = vst.msk [vmem:[#allocation2] sm:$0xff] %vm153, 0.0
      %155 = vst.msk [vmem:[#allocation2 + $0x8] sm:$0xff] %vm153, 0.0
      %156 = vst.msk [vmem:[#allocation3] sm:$0xff] %vm153, 0.0
      %157 = vst.msk [vmem:[#allocation3 + $0x8] sm:$0xff] %vm153, 0.0
    $region21: #{tpu_custom_call.1} parent=1 // pred_fallthru
      _
    %v158 = vld [vmem:[%s108] sm:$0xff]
    %v159 = vld [vmem:[%s108 + $0x8] sm:$0xff]
    %v160 = vld [vmem:[%s120] sm:$0xff]
    %v161 = vld [vmem:[%s120 + $0x8] sm:$0xff]
    %v162 = vld [vmem:[%s132] sm:$0xff]
    %v163 = vld [vmem:[%s132 + $0x8] sm:$0xff]
    %v164 = vld [vmem:[%s144] sm:$0xff]
    %v165 = vld [vmem:[%s144 + $0x8] sm:$0xff]
    %s166 = sadd.s32 0, 0
    %v167 = vlaneseq
    %v168 = vshrl.u32 %v167, 7
    %v169 = vadd.s32 %v168, 8
    %s170 = smul.u32 %s166, 16
    %v171 = vstv %s170
    %v172 = vadd.s32 %v168, %v171
    %v173 = vadd.s32 %v169, %v171
    %vm174 = vcmp.lt.s32.totalorder %v172, 16
    %vm175 = vcmp.lt.s32.totalorder %v173, 16
    %vm176 = vcmask 64512
    %v177 = vsel %vm176, %v158, -inf
    %178 = vmax.xlane.f32.xlu0 %v177
    %v179 = vpop.xlane.xlu0 %178
    %v180 = vsel %vm176, %v159, -inf
    %181 = vmax.xlane.f32.xlu0 %v180
    %v182 = vpop.xlane.xlu0 %181
    %v183 = vsub.f32 %v158, %v179
    %v184 = vsub.f32 %v159, %v182
    %v185 = vmul.f32 %v183, 1.442695
    %v186 = vpow.pop %v185
    %v187 = vmul.f32 %v184, 1.442695
    %v188 = vpow.pop %v187
    %v189 = vsel %vm176, %v186, 0.0
    %190 = vadd.xlane.f32.xlu0 %v189
    %v191 = vpop.xlane.xlu0 %190
    %v192 = vsel %vm176, %v188, 0.0
    %193 = vadd.xlane.f32.xlu0 %v192
    %v194 = vpop.xlane.xlu0 %193
    %v195 = vlog2.pop %v191
    %v196 = vmul.f32 %v195, 0.6931472
    %v197 = vlog2.pop %v194
    %v198 = vmul.f32 %v197, 0.6931472
    %v199 = vadd.f32 %v179, %v196
    %v200 = vadd.f32 %v182, %v198
    %v201 = vlaneseq
    %v202 = vand.u32 %v201, 127
    %203 = vset.pattern.permute.xlu0 0
    %204 = vperm.xlu0 %203, %v162
    %v205 = vpop.permute.xlu0 %204
    %206 = vset.pattern.permute.xlu0 0
    %207 = vperm.xlu0 %206, %v163
    %v208 = vpop.permute.xlu0 %207
    %vm209 = vcmp.eq.s32.totalorder %v202, %v205
    %vm210 = vcmp.eq.s32.totalorder %v202, %v208
    %v211 = vsel %vm209, %v158, 0.0
    %v212 = vsel %vm210, %v159, 0.0
    %v213 = vsel %vm176, %v211, 0.0
    %214 = vadd.xlane.f32.xlu0 %v213
    %v215 = vpop.xlane.xlu0 %214
    %v216 = vsel %vm176, %v212, 0.0
    %217 = vadd.xlane.f32.xlu0 %v216
    %v218 = vpop.xlane.xlu0 %217
    %v219 = vld [vmem:[#allocation2] sm:$0xff]
    %v220 = vld [vmem:[#allocation2 + $0x8] sm:$0xff]
    %v221 = vsub.f32 %v199, %v215
    %v222 = vsub.f32 %v200, %v218
    %v223 = vsel %vm174, %v221, 0.0
    %v224 = vsel %vm175, %v222, 0.0
    %v225 = vadd.f32 %v219, %v223
    %v226 = vadd.f32 %v220, %v224
    %vm227 = vcmask 7168
    %228 = vst.msk [vmem:[#allocation2] sm:$0xff] %vm227, %v225
    %229 = vst.msk [vmem:[#allocation2 + $0x8] sm:$0xff] %vm227, %v226
    %vm230 = vcmp.gt.s32.totalorder %v162, 0
    %vm231 = vcmp.gt.s32.totalorder %v163, 0
    %vm232 = vmand %vm230, %vm174
    %vm233 = vmand %vm231, %vm175
    %v234 = vsel %vm232, %v162, 4294967295
    %v235 = vsel %vm233, %v163, 4294967295
    %v236 = vmul.u32 %v234, 4
    %v237 = vmul.u32 %v235, 4
    %238 = vset.pattern.permute.xlu0 0
    %239 = vperm.xlu0 %238, %v236
    %v240 = vpop.permute.xlu0 %239
    %241 = vset.pattern.permute.xlu0 0
    %242 = vperm.xlu0 %241, %v237
    %v243 = vpop.permute.xlu0 %242
    %v244 = vsub.s32 %v202, %v240
    %v245 = vsub.s32 %v202, %v243
    %vm246 = vcmp.lt.u32.totalorder %v244, 4
    %vm247 = vcmp.lt.u32.totalorder %v245, 4
    %vm248 = vcmp.eq.s32.totalorder %v244, 0
    %vm249 = vcmp.eq.s32.totalorder %v245, 0
    %vm250 = vcmp.eq.s32.totalorder %v244, 1
    %vm251 = vcmp.eq.s32.totalorder %v245, 1
    %vm252 = vcmp.eq.s32.totalorder %v244, 2
    %vm253 = vcmp.eq.s32.totalorder %v245, 2
    %255 = vset.pattern.permute.xlu0 2
    %256 = vperm.xlu0 %255, %v164
    %v257 = vpop.permute.xlu0 %256
    %260 = vset.pattern.permute.xlu0 2
    %261 = vperm.xlu0 %260, %v165
    %v262 = vpop.permute.xlu0 %261
    %264 = vset.pattern.permute.xlu0 3
    %265 = vperm.xlu0 %264, %v164
    %v266 = vpop.permute.xlu0 %265
    %268 = vset.pattern.permute.xlu0 3
    %269 = vperm.xlu0 %268, %v165
    %v270 = vpop.permute.xlu0 %269
    %v272 = vsel %vm252, %v257, %v266
    %v273 = vsel %vm253, %v262, %v270
    %274 = vset.pattern.permute.xlu0 1
    %275 = vperm.xlu0 %274, %v164
    %v276 = vpop.permute.xlu0 %275
    %278 = vset.pattern.permute.xlu0 1
    %279 = vperm.xlu0 %278, %v165
    %v280 = vpop.permute.xlu0 %279
    %v282 = vsel %vm250, %v276, %v272
    %v283 = vsel %vm251, %v280, %v273
    %284 = vset.pattern.permute.xlu0 0
    %285 = vperm.xlu0 %284, %v164
    %v286 = vpop.permute.xlu0 %285
    %288 = vset.pattern.permute.xlu0 0
    %289 = vperm.xlu0 %288, %v165
    %v290 = vpop.permute.xlu0 %289
    %v292 = vsel %vm248, %v286, %v282
    %v293 = vsel %vm249, %v290, %v283
    %v294 = vsub.f32 %v160, %v292
    %v295 = vsub.f32 %v161, %v293
    %v296 = vsel %vm246, %v294, 0.0
    %v297 = vsel %vm247, %v295, 0.0
    %v298 = vand.u32 2147483647, %v296
    %v299 = vand.u32 2147483647, %v297
    %vm300 = vcmp.lt.f32.partialorder %v298, 0.11111111
    %vm301 = vcmp.lt.f32.partialorder %v299, 0.11111111
    %v302 = vmul.f32 %v296, 4.5
    %v303 = vmul.f32 %v297, 4.5
    %v304 = vmul.f32 %v302, %v296
    %v305 = vmul.f32 %v303, %v297
    %v306 = vsub.f32 %v298, 0.055555556
    %v307 = vsub.f32 %v299, 0.055555556
    %v308 = vsel %vm300, %v304, %v306
    %v309 = vsel %vm301, %v305, %v307
    %v310 = vld [vmem:[#allocation3] sm:$0xff]
    %v311 = vld [vmem:[#allocation3 + $0x8] sm:$0xff]
    %vm312 = vcmask 261120
    %v313 = vsel %vm312, %v308, 0.0
    %314 = vadd.xlane.f32.xlu0 %v313
    %v315 = vpop.xlane.xlu0 %314
    %v316 = vsel %vm312, %v309, 0.0
    %317 = vadd.xlane.f32.xlu0 %v316
    %v318 = vpop.xlane.xlu0 %317
    %v319 = vadd.f32 %v310, %v315
    %v320 = vadd.f32 %v311, %v318
    %321 = vst.msk [vmem:[#allocation3] sm:$0xff] %vm227, %v319
    %322 = vst.msk [vmem:[#allocation3 + $0x8] sm:$0xff] %vm227, %v320
    // Predicated region
    $region22: #{tpu_custom_call.1} parent=1 // pred_check
      %p323 = pneg %p149
    $region23: #{tpu_custom_call.1} parent=1 // pred_check_branch
      %325 = sbr.rel (%p323) target = $region25
    $region24: #{tpu_custom_call.1} parent=1 // pred_region
      %v326 = vld [vmem:[#allocation2] sm:$0xff]
      %v327 = vld [vmem:[#allocation2 + $0x8] sm:$0xff]
      %v328 = vsel %vm227, %v326, 0.0
      %v329 = vsel %vm227, %v327, 0.0
      %v330 = vadd.f32 %v328, %v329
      %v331 = vrot.slane %v330, 4
      %v332 = vadd.f32 %v330, %v331
      %v333 = vrot.slane %v332, 2
      %v334 = vadd.f32 %v332, %v333
      %v335 = vrot.slane %v334, 1
      %v336 = vadd.f32 %v334, %v335
      %vm337 = vcmask 0
      %338 = vst.msk [vmem:[#allocation4] sm:$0x1] %vm337, %v336
      %v339 = vld [vmem:[#allocation3] sm:$0xff]
      %v340 = vld [vmem:[#allocation3 + $0x8] sm:$0xff]
      %v341 = vsel %vm227, %v339, 0.0
      %v342 = vsel %vm227, %v340, 0.0
      %v343 = vadd.f32 %v341, %v342
      %v344 = vrot.slane %v343, 4
      %v345 = vadd.f32 %v343, %v344
      %v346 = vrot.slane %v345, 2
      %v347 = vadd.f32 %v345, %v346
      %v348 = vrot.slane %v347, 1
      %v349 = vadd.f32 %v347, %v348
      %350 = vst.msk [vmem:[#allocation6] sm:$0x1] %vm337, %v349
    $region25: #{tpu_custom_call.1} parent=1 // pred_fallthru
      _
    // Predicated region
    $region26: #{tpu_custom_call.1} parent=1 // pred_check
      _
    $region27: #{tpu_custom_call.1} parent=1 // pred_check_branch
      %352 = sbr.rel (0) target = $region29
    $region28: #{tpu_custom_call.1} parent=1 // pred_region
      %s354 = ssub.s32 16, 16
      %355 = vsyncadd [#allocation5], %s354
      %s357 = sshll.u32 [#allocation4], 4
      %s358 = int_to_ptr.vmem [resolvable:$true] %s357
      %360 = dma.vmem_to_hbm [thread:$0]  %s358, 16, %s4, [#allocation5]
    $region29: #{tpu_custom_call.1} parent=1 // pred_fallthru
      _
    // Predicated region
    $region30: #{tpu_custom_call.1} parent=1 // pred_check
      _
    $region31: #{tpu_custom_call.1} parent=1 // pred_check_branch
      %362 = sbr.rel (0) target = $region33
    $region32: #{tpu_custom_call.1} parent=1 // pred_region
      %s364 = ssub.s32 16, 16
      %365 = vsyncadd [#allocation7], %s364
      %s367 = sshll.u32 [#allocation6], 4
      %s368 = int_to_ptr.vmem [resolvable:$true] %s367
      %370 = dma.vmem_to_hbm [thread:$0]  %s368, 16, %s5, [#allocation7]
    $region33: #{tpu_custom_call.1} parent=1 // pred_fallthru
      _
    // Predicated region
    $region34: #{tpu_custom_call.1} parent=1 // pred_check
      _
    $region35: #{tpu_custom_call.1} parent=1 // pred_check_branch
      %372 = sbr.rel (0) target = $region37
    $region36: #{tpu_custom_call.1} parent=1 // pred_region
      %373 = dma.done [#allocation5], 16
    $region37: #{tpu_custom_call.1} parent=1 // pred_fallthru
      _
    // Predicated region
    $region38: #{tpu_custom_call.1} parent=1 // pred_check
      _
    $region39: #{tpu_custom_call.1} parent=1 // pred_check_branch
      %375 = sbr.rel (0) target = $region41
    $region40: #{tpu_custom_call.1} parent=1 // pred_region
      %376 = dma.done [#allocation7], 16
    $region41: #{tpu_custom_call.1} parent=1 // pred_fallthru
      _
    %377 = vsyncpa [#allocation5], 1
    %378 = vsyncpa [#allocation7], 1

</llo_original>
